<compile_context>
chip_gen: v7x
topology: tpu7x:2x2x1
jax: 0.10.0
libtpu: 0.0.40
codegen_flags: <defaults>
</compile_context>

<pallas_src>
import functools

import jax
import jax.numpy as jnp
import numpy as np
from jax.experimental import pallas as pl
from jax.experimental.pallas import tpu as pltpu


_VMEM_LIMIT = 32 * 1024 * 1024       # safe on v5e/v6e/v7x (<= scoped max everywhere)
_VMEM_TILE_BUDGET = 12 * 1024 * 1024  # budget for the double-buffered block working set
_MAX_HW_TILE = 4096                   # lanes


# --------------------------------------------------------------------------
# tile selection helpers
# --------------------------------------------------------------------------
def _pick_hw_tile(hw, bytes_per_lane, budget_bytes=_VMEM_TILE_BUDGET,
                  max_tile=_MAX_HW_TILE):
    """Largest lane tile (multiple of 128) keeping the pipelined working set
    under `budget_bytes`; small inputs use a single full-extent block."""
    cap = max(128, (budget_bytes // max(int(bytes_per_lane), 1)) // 128 * 128)
    tile = min(max_tile, cap)
    if hw <= tile:
        return hw            # block == full array dim (always legal)
    return tile              # multiple of 128; last block may be partial (masked)


def _pick_k_tile(in_c):
    """K (in-channel) tile for the 1x1 conv reduction axis."""
    for tk in (512, 256, 128):
        if in_c > tk and in_c % tk == 0:
            return tk
    return in_c


# --------------------------------------------------------------------------
# kernels (hot path lives here)
# --------------------------------------------------------------------------
def _copy_kernel(x_ref, o_ref):
    # Plain copy; used for cut_off when the leading channels are sliced at the
    # BlockSpec/DMA level.
    o_ref[...] = x_ref[...]


def _contract_add_kernel(x_ref, o_ref):
    # AddResConnection: split channels into chunks of out_C and sum them.
    out_c = o_ref.shape[1]
    in_c = x_ref.shape[1]
    # Start the accumulator from the first chunk (no explicit zeros init).
    acc = x_ref[:, :out_c, :].astype(jnp.float32)
    for r in range(1, in_c // out_c):
        acc = acc + x_ref[:, r * out_c:(r + 1) * out_c, :].astype(jnp.float32)
    o_ref[...] = acc.astype(o_ref.dtype)


def _cutoff_kernel(x_ref, o_ref):
    # CutOffResConnection fallback (out_C not 8-aligned): in-kernel slice.
    o_ref[...] = x_ref[:, :o_ref.shape[1], :]


def _repeat_kernel(x_ref, o_ref):
    # RepeatResConnection: store each replica slice directly (no jnp.tile, so
    # the full repeated array is never built in vregs).
    in_c = x_ref.shape[1]
    repeats = o_ref.shape[1] // in_c
    x = x_ref[...]
    for r in range(repeats):
        o_ref[:, r * in_c:(r + 1) * in_c, :] = x


def _zerofill_kernel(x_ref, o_ref):
    # ZeroFillResConnection: two direct stores instead of a concatenate.
    in_c = x_ref.shape[1]
    o_ref[:, :in_c, :] = x_ref[...]
    o_ref[:, in_c:, :] = jnp.zeros(
        (o_ref.shape[0], o_ref.shape[1] - in_c, o_ref.shape[2]), o_ref.dtype)


def _conv1x1_bn_kernel(x_ref, w_ref, shift_ref, o_ref, *, relu):
    # Single-K path: 1x1 conv == per-pixel channel matmul (out_C,in_C)@(in_C,T)
    # followed by the folded (bias + BN) shift and optional ReLU.  The BN scale
    # is already folded into the weight.
    y = jnp.dot(w_ref[...], x_ref[0], preferred_element_type=jnp.float32)
    y = y + shift_ref[...]
    if relu:
        y = jnp.maximum(y, 0.0)
    o_ref[0] = y.astype(o_ref.dtype)


def _conv1x1_bn_ktiled_kernel(x_ref, w_ref, shift_ref, o_ref, acc_ref, *, relu):
    # K-tiled path for large in_C: accumulate partial matmuls in an f32 VMEM
    # scratch, finalize (shift / ReLU / cast) on the last K step.
    k = pl.program_id(2)

    @pl.when(k == 0)
    def _():
        acc_ref[...] = jnp.zeros_like(acc_ref)

    acc_ref[...] += jnp.dot(w_ref[...], x_ref[0],
                            preferred_element_type=jnp.float32)

    @pl.when(k == pl.num_programs(2) - 1)
    def _():
        y = acc_ref[...] + shift_ref[...]
        if relu:
            y = jnp.maximum(y, 0.0)
        o_ref[0] = y.astype(o_ref.dtype)


# --------------------------------------------------------------------------
# pallas_call wrappers (glue)
# --------------------------------------------------------------------------
def _run_channel_kernel(kernel, x_nchw, out_channels, *,
                        in_block_channels=None, hw_tile=None):
    n, c, h, w = x_nchw.shape
    hw = h * w
    cb = c if in_block_channels is None else in_block_channels
    x = x_nchw.reshape(n, c, hw)
    itemsize = x.dtype.itemsize
    if hw_tile is None:
        # double-buffered input + output blocks per lane
        hw_tile = _pick_hw_tile(hw, 2 * (cb + out_channels) * itemsize)
    grid = (n, pl.cdiv(hw, hw_tile))
    out = pl.pallas_call(
        kernel,
        out_shape=jax.ShapeDtypeStruct((n, out_channels, hw), x.dtype),
        grid=grid,
        in_specs=[pl.BlockSpec((1, cb, hw_tile), lambda b, s: (b, 0, s))],
        out_specs=pl.BlockSpec((1, out_channels, hw_tile), lambda b, s: (b, 0, s)),
        compiler_params=pltpu.CompilerParams(
            dimension_semantics=("parallel", "parallel"),
            vmem_limit_bytes=_VMEM_LIMIT),
    )(x)
    return out.reshape(n, out_channels, h, w)


def _run_conv1x1(x_nchw, weight_folded, shift, relu, stride, hw_tile=None):
    if stride > 1:
        # kernel_size=1, stride=s  ->  pure spatial subsampling before the matmul.
        # TODO(synk): fold the stride-s subsampling into the kernel's DMA
        # (strided row gather) instead of this extra XLA slice pass.
        x_nchw = x_nchw[:, :, ::stride, ::stride]
    n, c, h, w = x_nchw.shape
    hw = h * w
    out_c = weight_folded.shape[0]
    x = x_nchw.reshape(n, c, hw)

    # Match the MXU input dtype to the activations (bf16 -> full-rate MXU,
    # halved DMA traffic); accumulation stays f32.
    mm_dtype = jnp.bfloat16 if x.dtype == jnp.bfloat16 else jnp.float32
    w_mm = weight_folded.astype(mm_dtype)
    shift2 = shift.reshape(out_c, 1).astype(jnp.float32)

    tk = _pick_k_tile(c)
    num_k = c // tk
    itemsize = x.dtype.itemsize
    if hw_tile is None:
        bytes_per_lane = 2 * (tk * itemsize + out_c * itemsize) + out_c * 4
        hw_tile = _pick_hw_tile(hw, bytes_per_lane)

    if num_k == 1:
        out = pl.pallas_call(
            functools.partial(_conv1x1_bn_kernel, relu=relu),
            out_shape=jax.ShapeDtypeStruct((n, out_c, hw), x.dtype),
            grid=(n, pl.cdiv(hw, hw_tile)),
            in_specs=[
                pl.BlockSpec((1, c, hw_tile), lambda b, s: (b, 0, s)),
                pl.BlockSpec((out_c, c), lambda b, s: (0, 0)),
                pl.BlockSpec((out_c, 1), lambda b, s: (0, 0)),
            ],
            out_specs=pl.BlockSpec((1, out_c, hw_tile), lambda b, s: (b, 0, s)),
            compiler_params=pltpu.CompilerParams(
                dimension_semantics=("parallel", "parallel"),
                vmem_limit_bytes=_VMEM_LIMIT),
        )(x, w_mm, shift2)
    else:
        out = pl.pallas_call(
            functools.partial(_conv1x1_bn_ktiled_kernel, relu=relu),
            out_shape=jax.ShapeDtypeStruct((n, out_c, hw), x.dtype),
            grid=(n, pl.cdiv(hw, hw_tile), num_k),
            in_specs=[
                pl.BlockSpec((1, tk, hw_tile), lambda b, s, k: (b, k, s)),
                pl.BlockSpec((out_c, tk), lambda b, s, k: (0, k)),
                pl.BlockSpec((out_c, 1), lambda b, s, k: (0, 0)),
            ],
            out_specs=pl.BlockSpec((1, out_c, hw_tile), lambda b, s, k: (b, 0, s)),
            scratch_shapes=[pltpu.VMEM((out_c, hw_tile), jnp.float32)],
            compiler_params=pltpu.CompilerParams(
                dimension_semantics=("parallel", "parallel", "arbitrary"),
                vmem_limit_bytes=_VMEM_LIMIT),
        )(x, w_mm, shift2)
    return out.reshape(n, out_c, h, w)


# --------------------------------------------------------------------------
# ResConnection (mirrors the PyTorch module)
# --------------------------------------------------------------------------
class ResConnection:
    CONV_PARAMS = {'kernel_size': 1, 'batch_norm': True, 'activation': False}

    def __init__(self, in_channels, out_channels, downsampling=False,
                 type_dict=None, key=None, hw_tile=None):
        if type_dict is None:
            type_dict = {'identity': {'expand_method': 'fill_with_zeros',
                                      'contract_method': 'add'}}
        if isinstance(type_dict, str):
            type_dict = {type_dict: {}}
        (shortcut_type, params), = type_dict.items()

        self.in_channels = in_channels
        self.out_channels = out_channels
        self.hw_tile = hw_tile

        if shortcut_type == 'identity':
            if downsampling:
                raise NotImplementedError(
                    'Identity skip connection with changing spatial size is '
                    'not implemented.')
            if in_channels == out_channels:
                self.mode = 'identity'
            elif in_channels < out_channels:
                expand = params.get('expand_method', 'fill_with_zeros')
                if expand == 'fill_with_zeros':
                    self.mode = 'zerofill'
                elif expand == 'repeat':
                    if out_channels % in_channels != 0:
                        raise ValueError('repeat needs out % in == 0')
                    self.mode = 'repeat'
                else:
                    raise ValueError(f'bad expand method {expand}')
            else:
                contract = params.get('contract_method', 'add')
                if contract == 'add':
                    if in_channels % out_channels != 0:
                        raise ValueError('add needs in % out == 0')
                    self.mode = 'add'
                elif contract == 'cut_off':
                    self.mode = 'cutoff'
                else:
                    raise ValueError(f'bad contract method {contract}')
        elif shortcut_type in ('conv', 'convolution'):
            p = dict(self.CONV_PARAMS)
            p.update(params)
            if p['kernel_size'] != 1:
                # TODO(synk): only kernel_size=1 (the module default) is implemented.
                raise NotImplementedError('only kernel_size=1 implemented')
            self.mode = 'conv'
            self.stride = 1 + int(bool(downsampling))
            self.relu = bool(p['activation'])
            key = jax.random.PRNGKey(0) if key is None else key
            kw, kb = jax.random.split(key)
            # Deterministic Conv2d init (PyTorch kaiming-uniform-style bounds).
            fan_in = in_channels * 1 * 1
            bound = 1.0 / float(np.sqrt(fan_in))
            self.weight = jax.random.uniform(
                kw, (out_channels, in_channels), jnp.float32, -bound, bound)
            self.bias = jax.random.uniform(
                kb, (out_channels,), jnp.float32, -bound, bound)
            if p['batch_norm']:
                # TODO(synk): BatchNorm is applied in inference mode (running
                # stats, default init); training-mode batch statistics are not
                # computed in the kernel.
                gamma = jnp.ones((out_channels,), jnp.float32)
                beta = jnp.zeros((out_channels,), jnp.float32)
                running_mean = jnp.zeros((out_channels,), jnp.float32)
                running_var = jnp.ones((out_channels,), jnp.float32)
                eps = 1e-5
                s = gamma / jnp.sqrt(running_var + eps)
                self.scale = s
                self.shift = beta - running_mean * s + self.bias * s
            else:
                self.scale = jnp.ones((out_channels,), jnp.float32)
                self.shift = self.bias
            # Fold the BN scale into the weight once (host-side) so the kernel
            # only adds the shift after the matmul.
            self.weight_folded = self.weight * self.scale[:, None]
        else:
            raise ValueError(f'bad shortcut type {shortcut_type}')

    def __call__(self, x):
        if self.mode == 'identity':
            # nn.Identity: return the input directly — no HBM round trip.
            return x
        if self.mode == 'add':
            return _run_channel_kernel(_contract_add_kernel, x,
                                       self.out_channels, hw_tile=self.hw_tile)
        if self.mode == 'cutoff':
            if self.out_channels % 8 == 0:
                # DMA only the first out_C channels (BlockSpec-level slice).
                return _run_channel_kernel(
                    _copy_kernel, x, self.out_channels,
                    in_block_channels=self.out_channels, hw_tile=self.hw_tile)
            return _run_channel_kernel(_cutoff_kernel, x, self.out_channels,
                                       hw_tile=self.hw_tile)
        if self.mode == 'repeat':
            return _run_channel_kernel(_repeat_kernel, x, self.out_channels,
                                       hw_tile=self.hw_tile)
        if self.mode == 'zerofill':
            return _run_channel_kernel(_zerofill_kernel, x, self.out_channels,
                                       hw_tile=self.hw_tile)
        if self.mode == 'conv':
            return _run_conv1x1(x, self.weight_folded, self.shift,
                                self.relu, self.stride, hw_tile=self.hw_tile)
        raise AssertionError(self.mode)


# --------------------------------------------------------------------------
# demo / correctness check
# --------------------------------------------------------------------------
if __name__ == "__main__":
    key = jax.random.PRNGKey(0)
    k1, k2, k3, k4, k5, k6, k7, k8 = jax.random.split(key, 8)
    N, H, W = 2, 16, 16
    x4 = jax.random.normal(k1, (N, 4, H, W), jnp.float32)     # 4 channels
    x8 = jax.random.normal(k2, (N, 8, H, W), jnp.float32)     # 8 channels
    x16 = jax.random.normal(k4, (N, 16, H, W), jnp.float32)   # 16 channels
    x8b = jax.random.normal(k5, (N, 8, 12, 12), jnp.float32)  # non-128-mult HW
    x512 = jax.random.normal(k6, (N, 512, 8, 8), jnp.float32)  # exercises K tiling

    def check(got, want, rtol=1e-5, atol=1e-5):
        got = jax.block_until_ready(got)
        got = np.asarray(jnp.asarray(got, jnp.float32))
        np.testing.assert_allclose(got, np.asarray(want, dtype=np.float32),
                                   rtol=rtol, atol=atol)

    def conv_bn_ref(x_np, w_np, b_np, relu=False, stride=1):
        if stride > 1:
            x_np = x_np[:, :, ::stride, ::stride]
        y = np.einsum('oc,nchw->nohw',
                      np.asarray(w_np, np.float64), np.asarray(x_np, np.float64))
        y = y + np.asarray(b_np, np.float64)[None, :, None, None]
        y = y / np.sqrt(1.0 + 1e-5)       # BN with default running stats (eval)
        if relu:
            y = np.maximum(y, 0.0)
        return y.astype(np.float32)

    # identity (in == out): kernel skipped entirely
    m = ResConnection(4, 4)
    check(m(x4), x4)

    # contract: add (default type_dict, in > out)
    m = ResConnection(8, 4)
    check(m(x8), x8.reshape(N, 2, 4, H, W).sum(axis=1))

    # contract: add, HW not a multiple of the tile (partial/masked edge block)
    m = ResConnection(8, 4, hw_tile=128)
    check(m(x8b), x8b.reshape(N, 2, 4, 12, 12).sum(axis=1))

    # contract: cut_off (out_C not 8-aligned -> in-kernel slice fallback)
    m = ResConnection(8, 4, type_dict={'identity': {'contract_method': 'cut_off'}})
    check(m(x8), x8[:, :4])

    # contract: cut_off (out_C 8-aligned -> BlockSpec/DMA-level channel slice)
    m = ResConnection(16, 8, type_dict={'identity': {'contract_method': 'cut_off'}})
    check(m(x16), x16[:, :8])

    # expand: fill_with_zeros (default type_dict, in < out)
    m = ResConnection(4, 8)
    ref = jnp.concatenate([x4, jnp.zeros((N, 4, H, W), jnp.float32)], axis=1)
    check(m(x4), ref)

    # expand: repeat
    m = ResConnection(4, 8, type_dict={'identity': {'expand_method': 'repeat'}})
    check(m(x4), jnp.concatenate([x4, x4], axis=1))

    # convolution shortcut: 1x1 conv + BatchNorm (eval), no activation, f32
    m = ResConnection(4, 8, type_dict={'convolution': {}}, key=k3)
    check(m(x4), conv_bn_ref(np.asarray(x4), np.asarray(m.weight),
                             np.asarray(m.bias)), rtol=1e-4, atol=1e-4)

    # same conv, bf16 activations (bf16 weight / full-rate MXU path)
    xb = x4.astype(jnp.bfloat16)
    xb_f32 = np.asarray(xb.astype(jnp.float32))
    check(m(xb), conv_bn_ref(xb_f32, np.asarray(m.weight), np.asarray(m.bias)),
          rtol=5e-2, atol=5e-2)

    # convolution shortcut with downsampling (stride 2) + ReLU
    m = ResConnection(4, 8, downsampling=True,
                      type_dict={'convolution': {'activation': True}}, key=k7)
    check(m(x4), conv_bn_ref(np.asarray(x4), np.asarray(m.weight),
                             np.asarray(m.bias), relu=True, stride=2),
          rtol=1e-4, atol=1e-4)

    # convolution shortcut with large in_C (exercises the K-reduction grid axis)
    m = ResConnection(512, 128, type_dict={'convolution': {}}, key=k8)
    check(m(x512), conv_bn_ref(np.asarray(x512), np.asarray(m.weight),
                               np.asarray(m.bias)), rtol=1e-3, atol=1e-3)

    print("KERNEL_OK")
</pallas_src>

<mosaic_0001>
module attributes {stable_mosaic.version = 11 : i64} {
  func.func @_contract_add_kernel(%arg0: i32, %arg1: i32, %arg2: memref<1x8x256xf32, #tpu.memory_space<vmem>>, %arg3: memref<1x4x256xf32, #tpu.memory_space<vmem>>) attributes {dimension_semantics = [#tpu.dimension_semantics<parallel>, #tpu.dimension_semantics<parallel>], iteration_bounds = array<i64: 2, 1>, scalar_prefetch = 0 : i64, scratch_operands = 0 : i64, tpu.core_type = #tpu.core_type<tc>, window_params = [{transform_indices = @transform_0, window_bounds = array<i64: 1, 8, 256>}, {transform_indices = @transform_1, window_bounds = array<i64: 1, 4, 256>}]} {
    %c0 = arith.constant 0 : index
    %c0_0 = arith.constant 0 : index
    %c0_1 = arith.constant 0 : index
    %0 = vector.load %arg2[%c0, %c0_0, %c0_1] : memref<1x8x256xf32, #tpu.memory_space<vmem>>, vector<1x4x256xf32>
    %c0_2 = arith.constant 0 : index
    %c4 = arith.constant 4 : index
    %c0_3 = arith.constant 0 : index
    %1 = vector.load %arg2[%c0_2, %c4, %c0_3] : memref<1x8x256xf32, #tpu.memory_space<vmem>>, vector<1x4x256xf32>
    %2 = arith.addf %0, %1 : vector<1x4x256xf32>
    %c0_4 = arith.constant 0 : index
    %c0_5 = arith.constant 0 : index
    %c0_6 = arith.constant 0 : index
    %3 = vector.load %arg3[%c0_4, %c0_5, %c0_6] : memref<1x4x256xf32, #tpu.memory_space<vmem>>, vector<1x4x256xf32>
    tpu.vector_store %arg3[%c0_4, %c0_5, %c0_6], %2 {strides = array<i32>} : memref<1x4x256xf32, #tpu.memory_space<vmem>>, vector<1x4x256xf32>,
    return
  }
  func.func @transform_0(%arg0: i32, %arg1: i32) -> (i32, i32, i32) {
    %c0_i32 = arith.constant 0 : i32
    %c0_i32_0 = arith.constant 0 : i32
    return %arg0, %c0_i32, %arg1 : i32, i32, i32
  }
  func.func @transform_1(%arg0: i32, %arg1: i32) -> (i32, i32, i32) {
    %c0_i32 = arith.constant 0 : i32
    %c0_i32_0 = arith.constant 0 : i32
    return %arg0, %c0_i32, %arg1 : i32, i32, i32
  }
}

</mosaic_0001>

<llo_original>
// kernel: tpu_custom_call.1
$region0: #{tpu_custom_call.1}
  #allocation0 [shape = 'u32[]', space=smem, size = 0x4, offset = 0x4, fixed_abs, tag = 'smem constant byte address 0x4 - core index']
  #allocation1 [shape = 'u32[144,128]{1,0:T(1,128)}', space=vmem, size = 0x12000, scoped, tag = 'internal scratch']
  %s0 = inlined_call_operand.hbm [shape: f32[2,8,256], index: 0, kind: input, shape index: {}]
  %s1 = inlined_call_operand.hbm [shape: f32[2,4,256], index: 1, kind: output, shape index: {}]
  %s2 = sld [smem:[#allocation0]]
  $region41: #{tpu_custom_call.1} parent=0
    _
  %s4 = ssub.s32 1, %s2
  %s5 = scalar_select 0, %s4, %s2
  $region1: #{tpu_custom_call.1} parent=0
    #allocation2 [shape = 'u8[16384]{0}', space=vmem, size = 0x4000, scoped, tag = 'input window, operand 0']
    #allocation3 [shape = 's32[2]{0}', space=sflag, size = 0x8, scoped, tag = 'scoped memory for tpu_custom_call.1']
    #allocation4 [shape = 's32[2]{0}', space=sflag, size = 0x8, scoped, tag = 'scoped memory for tpu_custom_call.1']
    #allocation5 [shape = 'u8[8192]{0}', space=vmem, size = 0x2000, scoped, tag = 'output window, operand 0']
    %6 = vsyncpa [#allocation3], 0
    %s7 = scalar_lea.sflag [#allocation3], 1
    %8 = vsyncpa %s7, 0
    %9 = vsyncpa [#allocation4], 0
    %s10 = scalar_lea.sflag [#allocation4], 1
    %11 = vsyncpa %s10, 0
    loop: start=0, step=1, limit=4
    $region2: #{tpu_custom_call.1} parent=1 // loop_pre_header
      _
    $region3: #{tpu_custom_call.1} parent=1 // loop_header
      %s13 = sphi 0, %s17
      %p14 = scmp.ge.s32.totalorder %s13, 4
      %s20 = sphi 0, %s32
      %s21 = sphi 0, %s28
      %s22 = sphi 0, %s20
      %s23 = sphi 0, %s21
      %s24 = sphi 0, %s22
      %s25 = sphi 0, %s23
      %s37 = sphi 0, %s39
      %s40 = sphi 0, %s37
      %s41 = sphi 0, %s40
      %s57 = sphi 0, %s41
      %s65 = sphi 0, %s67
      %s68 = sphi 0, %s65
      %s69 = sphi 0, %s68
      %s85 = sphi 0, %s69
    $region4: #{tpu_custom_call.1} parent=1 // loop_header_branch
      %16 = sbr.rel (%p14) target = $region8
    $region5: #{tpu_custom_call.1} parent=1 // loop_body
      %s18 = ssub.s32 %s13, 1
      %s19 = ssub.s32 %s13, 2
      %s26 = sadd.s32 1, %s21
      %p27 = scmp.ge.s32.totalorder %s26, 1
      %s28 = scalar_select %p27, 0, %s26
      %s29 = sadd.s32 1, %s20
      %s30 = scalar_select %p27, %s29, %s20
      %p31 = scmp.ge.s32.totalorder %s30, 2
      %s32 = scalar_select %p31, 0, %s30
      %s33 = ssub.s32 %s20, %s32
      %s34 = ssub.s32 %s21, %s28
      %s35 = sor.u32 %s33, %s34
      %p36 = scmp.eq.s32.totalorder %s35, 0
      %s38 = sadd.s32 %s37, 1
      %s39 = scalar_select %p36, %s37, %s38
      %p42 = pneg %p36
      %p43 = scmp.eq.s32.totalorder %s13, 1
      %p44 = por %p42, %p43
      %p45 = scmp.ne.s32.totalorder %s37, %s40
      %p46 = scmp.eq.s32.totalorder %s13, 0
      %p47 = por %p45, %p46
      %p48 = scmp.ne.s32.totalorder %s37, %s40
      %p49 = scmp.eq.s32.totalorder %s18, 1
      %p50 = por %p48, %p49
      %p51 = scmp.ne.s32.totalorder %s40, %s41
      %p52 = scmp.eq.s32.totalorder %s18, 0
      %p53 = por %p51, %p52
      %p54 = scmp.ne.s32.totalorder %s40, %s41
      %p55 = scmp.eq.s32.totalorder %s19, 1
      %p56 = por %p54, %p55
      %p58 = scmp.ne.s32.totalorder %s41, %s57
      %p59 = scmp.eq.s32.totalorder %s19, 0
      %p60 = por %p58, %p59
      %s61 = ssub.s32 %s20, %s32
      %s62 = ssub.s32 %s21, %s28
      %s63 = sor.u32 %s61, %s62
      %p64 = scmp.eq.s32.totalorder %s63, 0
      %s66 = sadd.s32 %s65, 1
      %s67 = scalar_select %p64, %s65, %s66
      %p70 = pneg %p64
      %p71 = scmp.eq.s32.totalorder %s13, 1
      %p72 = por %p70, %p71
      %p73 = scmp.ne.s32.totalorder %s65, %s68
      %p74 = scmp.eq.s32.totalorder %s13, 0
      %p75 = por %p73, %p74
      %p76 = scmp.ne.s32.totalorder %s65, %s68
      %p77 = scmp.eq.s32.totalorder %s18, 1
      %p78 = por %p76, %p77
      %p79 = scmp.ne.s32.totalorder %s68, %s69
      %p80 = scmp.eq.s32.totalorder %s18, 0
      %p81 = por %p79, %p80
      %p82 = scmp.ne.s32.totalorder %s68, %s69
      %p83 = scmp.eq.s32.totalorder %s19, 1
      %p84 = por %p82, %p83
      %p86 = scmp.ne.s32.totalorder %s69, %s85
      %p87 = scmp.eq.s32.totalorder %s19, 0
      %p88 = por %p86, %p87
      %p89 = scmp.le.s32.totalorder 1, %s13
      %p90 = scmp.lt.s32.totalorder %s13, 3
      %p91 = pnand %p89, %p90
      %p92 = pneg %p91
      // Predicated region
      $region9: #{tpu_custom_call.1} parent=5 // pred_check
        _
      $region10: #{tpu_custom_call.1} parent=5 // pred_check_branch
        %94 = sbr.rel (%p91) target = $region12
      $region11: #{tpu_custom_call.1} parent=5 // pred_region
        %s95 = ssub.s32 %s13, 1
      $region12: #{tpu_custom_call.1} parent=5 // pred_fallthru
        _
      %p96 = scmp.lt.s32.totalorder %s13, 2
      // Predicated region
      $region13: #{tpu_custom_call.1} parent=5 // pred_check
        %p97 = pneg %p96
      $region14: #{tpu_custom_call.1} parent=5 // pred_check_branch
        %99 = sbr.rel (%p97) target = $region16
      $region15: #{tpu_custom_call.1} parent=5 // pred_region
        // Predicated region
        $region17: #{tpu_custom_call.1} parent=15 // pred_check
          %p100 = pneg %p47
        $region18: #{tpu_custom_call.1} parent=15 // pred_check_branch
          %102 = sbr.rel (%p100) target = $region20
        $region19: #{tpu_custom_call.1} parent=15 // pred_region
          %s103 = sand.u32 %s37, 1
          %s104 = scalar_lea.sflag [#allocation3], %s103
          %s105 = sand.u32 %s37, 1
          %s106 = smul.addr %s105, 16
          %s107 = scalar_lea.vmem [#allocation2], %s106
          %s108 = smul.u32 2, %s21
          %s110 = ssub.s32 256, 256
          %111 = vsyncadd %s104, %s110
          %s112 = smul.addr %s20, 2
          %s113 = sadd.s32 %s108, %s112
          %s114 = smul.addr %s113, 128
          %s115 = scalar_lea.hbm %s0, %s114
          %s117 = sshll.u32 %s107, 4
          %s118 = int_to_ptr.vmem [resolvable:$true] %s117
          %120 = dma.hbm_to_vmem [thread:$0]  %s115, 256, %s118, %s104
        $region20: #{tpu_custom_call.1} parent=15 // pred_fallthru
          _
      $region16: #{tpu_custom_call.1} parent=5 // pred_fallthru
        _
      %p121 = scmp.le.s32.totalorder 1, %s13
      %p122 = scmp.lt.s32.totalorder %s13, 3
      %p123 = pnand %p121, %p122
      %p124 = pneg %p123
      // Predicated region
      $region21: #{tpu_custom_call.1} parent=5 // pred_check
        _
      $region22: #{tpu_custom_call.1} parent=5 // pred_check_branch
        %126 = sbr.rel (%p123) target = $region24
      $region23: #{tpu_custom_call.1} parent=5 // pred_region
        %s127 = ssub.s32 %s13, 1
        %s128 = sand.u32 %s40, 1
        %s129 = scalar_lea.sflag [#allocation3], %s128
        %s130 = sand.u32 %s40, 1
        %s131 = smul.addr %s130, 16
        %s132 = scalar_lea.vmem [#allocation2], %s131
        // Predicated region
        $region25: #{tpu_custom_call.1} parent=23 // pred_check
          %p133 = pneg %p53
        $region26: #{tpu_custom_call.1} parent=23 // pred_check_branch
          %135 = sbr.rel (%p133) target = $region28
        $region27: #{tpu_custom_call.1} parent=23 // pred_region
          %136 = dma.done %s129, 256
        $region28: #{tpu_custom_call.1} parent=23 // pred_fallthru
          _
        %s137 = sand.u32 %s40, 1
        %s138 = scalar_lea.sflag [#allocation3], %s137
        %s139 = sand.u32 %s40, 1
        %s140 = smul.addr %s139, 16
        %s141 = scalar_lea.vmem [#allocation2], %s140
        %p142 = pneg %p53
        %p143 = pneg %p50
        %p144 = pneg %p81
        %p145 = pneg %p78
        %s146 = sand.u32 %s68, 1
        %s147 = scalar_lea.sflag [#allocation4], %s146
        %s148 = sand.u32 %s68, 1
        %s149 = smul.addr %s148, 8
        %s150 = scalar_lea.vmem [#allocation5], %s149
        %s151 = smul.u32 2, %s23
        %s152 = smul.u32 2, %s23
        %v153 = vld [vmem:[%s132] sm:$0xf]
        %v154 = vld [vmem:[%s132 + $0x8] sm:$0xf]
        %v155 = vld [vmem:[%s132] sm:$0xf0]
        %v156 = vld [vmem:[%s132 + $0x8] sm:$0xf0]
        %v159 = vrot.slane %v155, 4
        %v160 = vrot.slane %v156, 4
        %v163 = vadd.f32 %v153, %v159
        %v164 = vadd.f32 %v154, %v160
        %v167 = vcombine.low %v163, %v164
        %169 = vst [vmem:[%s150] sm:$0xff] %v167
        %s170 = sand.u32 %s68, 1
        %s171 = scalar_lea.sflag [#allocation4], %s170
        %s172 = sand.u32 %s68, 1
        %s173 = smul.addr %s172, 8
        %s174 = scalar_lea.vmem [#allocation5], %s173
        // Predicated region
        $region29: #{tpu_custom_call.1} parent=23 // pred_check
          %p175 = pneg %p78
        $region30: #{tpu_custom_call.1} parent=23 // pred_check_branch
          %177 = sbr.rel (%p175) target = $region32
        $region31: #{tpu_custom_call.1} parent=23 // pred_region
          %s178 = smul.u32 2, %s23
          %s180 = ssub.s32 128, 128
          %181 = vsyncadd %s171, %s180
          %s182 = smul.addr %s22, 2
          %s183 = sadd.s32 %s178, %s182
          %s184 = smul.addr %s183, 64
          %s185 = scalar_lea.hbm %s1, %s184
          %s187 = sshll.u32 %s174, 4
          %s188 = int_to_ptr.vmem [resolvable:$true] %s187
          %190 = dma.vmem_to_hbm [thread:$0]  %s188, 128, %s185, %s171
        $region32: #{tpu_custom_call.1} parent=23 // pred_fallthru
          _
      $region24: #{tpu_custom_call.1} parent=5 // pred_fallthru
        _
      %p191 = scmp.le.s32.totalorder 2, %s13
      // Predicated region
      $region33: #{tpu_custom_call.1} parent=5 // pred_check
        %p192 = pneg %p191
      $region34: #{tpu_custom_call.1} parent=5 // pred_check_branch
        %194 = sbr.rel (%p192) target = $region36
      $region35: #{tpu_custom_call.1} parent=5 // pred_region
        %s195 = ssub.s32 %s13, 2
        // Predicated region
        $region37: #{tpu_custom_call.1} parent=35 // pred_check
          %p196 = pneg %p84
        $region38: #{tpu_custom_call.1} parent=35 // pred_check_branch
          %198 = sbr.rel (%p196) target = $region40
        $region39: #{tpu_custom_call.1} parent=35 // pred_region
          %s199 = sand.u32 %s69, 1
          %s200 = scalar_lea.sflag [#allocation4], %s199
          %s201 = sand.u32 %s69, 1
          %s202 = smul.addr %s201, 8
          %s203 = scalar_lea.vmem [#allocation5], %s202
          %204 = dma.done %s200, 128
        $region40: #{tpu_custom_call.1} parent=35 // pred_fallthru
          _
      $region36: #{tpu_custom_call.1} parent=5 // pred_fallthru
        _
    $region6: #{tpu_custom_call.1} parent=1 // loop_footer
      %s17 = sadd.s32 1, %s13
    $region7: #{tpu_custom_call.1} parent=1 // loop_footer_branch
      %12 = sbr.rel target = $region3
    $region8: #{tpu_custom_call.1} parent=1 // loop_exit
      _
    %205 = vsyncpa [#allocation3], 1
    %s206 = scalar_lea.sflag [#allocation3], 1
    %207 = vsyncpa %s206, 1
    %208 = vsyncpa [#allocation4], 1
    %s209 = scalar_lea.sflag [#allocation4], 1
    %210 = vsyncpa %s209, 1

</llo_original>
